<compile_context>
chip_gen: v7x
topology: tpu7x:2x2x1
jax: 0.10.0
libtpu: 0.0.40
codegen_flags: <defaults>
</compile_context>

<pallas_src>
import functools

import jax
import jax.numpy as jnp
from jax.experimental import pallas as pl
from jax.experimental.pallas import tpu as pltpu

_LANE = 128
_SUB = 8
_VMEM_LIMIT = 32 * 1024 * 1024   # explicit (v5e scoped default is only 16 MiB)


def _round_up(a, b):
    return (a + b - 1) // b * b


def _num_tensorcores() -> int:
    """2 TensorCores per chip on v7x / v5p / v4 (megacore), 1 on v5e / v6e."""
    try:
        kind = jax.devices()[0].device_kind.lower()
    except Exception:
        return 1
    if any(tag in kind for tag in ("v7", "7x", "v5p", "v4")):
        return 2
    return 1


# ----------------------------------------------------------------------------
# beta == 0 path: lane-dense packed logit columns, narrow y, vreg accumulators.
# ----------------------------------------------------------------------------
def _imlm_dense_kernel(xp_ref, y_ref, o_ref):
    j = pl.program_id(1)

    @pl.when(j == 0)
    def _init():
        o_ref[...] = jnp.zeros_like(o_ref)

    y = y_ref[...].astype(jnp.float32)                 # (tile_r, 128); widen on VPU
    e0 = jnp.exp(xp_ref[0].astype(jnp.float32))        # exp(x[:, 0]) lane-dense
    e1 = jnp.exp(xp_ref[1].astype(jnp.float32))        # exp(x[:, 1]) lane-dense

    g = y.shape[0] // _SUB
    # vreg-sized partial sums: reduce the tile to one (8,128) vreg per term and
    # do a single-vreg RMW on the resident output block (no full-tile RMW).
    o_ref[0, 0, :, :] = o_ref[0, 0, :, :] + (e0 * y).reshape(g, _SUB, _LANE).sum(axis=0)
    o_ref[0, 1, :, :] = o_ref[0, 1, :, :] + (e1 * (1.0 - y)).reshape(g, _SUB, _LANE).sum(axis=0)
    o_ref[0, 2, :, :] = o_ref[0, 2, :, :] + y.reshape(g, _SUB, _LANE).sum(axis=0)


def _imlm_dense_partials(x, y):
    n, _ = x.shape
    ncores = _num_tensorcores()

    r = pl.cdiv(n, _LANE)                               # rows at 128 lanes per row
    tile_r = max(32, min(4096, _round_up(r, 32)))       # mult of 32 (safe for int8 y)
    blocks = _round_up(pl.cdiv(r, tile_r), ncores)
    r_pad = blocks * tile_r
    n_pad = r_pad * _LANE
    pad = n_pad - n

    # Single fused pack of the two consumed logit columns into one lane-dense
    # (2, r_pad, 128) slab (8 B/sample written, one DMA stream in the kernel).
    # Padding with -1e30 makes exp() of the tail exactly 0, so padded samples
    # contribute nothing to either term.
    xp = jnp.pad(x[:, :2].T, ((0, 0), (0, pad)), constant_values=-1e30)
    xp = xp.reshape(2, r_pad, _LANE)

    # y stays in its narrowest dtype (no wrapper f32 upcast); widened in-kernel.
    y_in = y.astype(jnp.int8) if y.dtype == jnp.bool_ else y
    yp = jnp.pad(y_in, (0, pad)).reshape(r_pad, _LANE)

    per_core = blocks // ncores
    return pl.pallas_call(
        _imlm_dense_kernel,
        out_shape=jax.ShapeDtypeStruct((ncores, 3, _SUB, _LANE), jnp.float32),
        grid=(ncores, per_core),
        in_specs=[
            pl.BlockSpec((2, tile_r, _LANE), lambda ci, j: (0, ci * per_core + j, 0)),
            pl.BlockSpec((tile_r, _LANE), lambda ci, j: (ci * per_core + j, 0)),
        ],
        out_specs=pl.BlockSpec((1, 3, _SUB, _LANE), lambda ci, j: (ci, 0, 0, 0)),
        compiler_params=pltpu.CompilerParams(
            dimension_semantics=("parallel", "arbitrary"),
            vmem_limit_bytes=_VMEM_LIMIT,
        ),
    )(xp, yp)


# ----------------------------------------------------------------------------
# beta > 0 path: softmax over all C columns, streamed as (TILE_N, C) blocks.
# ----------------------------------------------------------------------------
def _imlm_softmax_kernel(x_ref, y_ref, o_ref, *, beta, mult, n_valid):
    j = pl.program_id(1)

    @pl.when(j == 0)
    def _init():
        o_ref[...] = jnp.zeros_like(o_ref)

    tile_n = x_ref.shape[0]
    block = pl.program_id(0) * pl.num_programs(1) + j
    row0 = block * tile_n
    rows = row0 + jax.lax.broadcasted_iota(jnp.int32, (tile_n, 1), 0)
    valid = (rows < n_valid).astype(jnp.float32)        # kills the pos term on padded rows

    y = y_ref[...].astype(jnp.float32)                  # (tile_n, 1); 0 on padded rows
    # NOTE: exp() before the softmax matches the PyTorch module; very large
    # logits overflow to inf exactly as the reference would.
    ex = jnp.exp(x_ref[...].astype(jnp.float32))        # (tile_n, C)
    z = (beta * mult) * ex
    z = z - jnp.max(z, axis=-1, keepdims=True)
    e = jnp.exp(z)
    denom = jnp.sum(e, axis=-1, keepdims=True)
    p0 = e[:, 0:1] / denom                               # exact divide (ample EUP/VALU slack)
    p1 = e[:, 1:2] / denom

    pa = jnp.sum(p0 * y, axis=0, keepdims=True)                    # (1, 1)
    pb = jnp.sum(p1 * (1.0 - y) * valid, axis=0, keepdims=True)
    ps = jnp.sum(y, axis=0, keepdims=True)
    o_ref[0, 0, 0:1, 0:1] = o_ref[0, 0, 0:1, 0:1] + pa
    o_ref[0, 1, 0:1, 0:1] = o_ref[0, 1, 0:1, 0:1] + pb
    o_ref[0, 2, 0:1, 0:1] = o_ref[0, 2, 0:1, 0:1] + ps


def _imlm_softmax_partials(x, y, beta, mult):
    n, c = x.shape
    ncores = _num_tensorcores()

    # Tile sizing accounts for VMEM lane padding: each row costs
    # round_up(C,128)*itemsize in VMEM regardless of C; cap at 2048 rows.
    c_pad = _round_up(c, _LANE)
    bytes_per_row = c_pad * max(x.dtype.itemsize, 1)
    tile_n = ((2 * 1024 * 1024) // bytes_per_row) // 32 * 32
    tile_n = max(32, min(2048, tile_n))
    tile_n = min(tile_n, max(32, _round_up(n, 32)))
    # TODO(synk): extremely wide C (block > VMEM) would need a column grid axis
    # with an online-softmax accumulator; the class axis is not tiled here.

    blocks = _round_up(pl.cdiv(n, tile_n), ncores)
    n_pad = blocks * tile_n
    pad = n_pad - n

    xp = jnp.pad(x, ((0, pad), (0, 0)))                 # padded rows masked in-kernel
    y_in = y.astype(jnp.int8) if y.dtype == jnp.bool_ else y
    yp = jnp.pad(y_in, (0, pad)).reshape(n_pad, 1)

    per_core = blocks // ncores
    kernel = functools.partial(_imlm_softmax_kernel, beta=beta, mult=mult, n_valid=n)
    return pl.pallas_call(
        kernel,
        out_shape=jax.ShapeDtypeStruct((ncores, 3, _SUB, _LANE), jnp.float32),
        grid=(ncores, per_core),
        in_specs=[
            pl.BlockSpec((tile_n, c), lambda ci, j: (ci * per_core + j, 0)),
            pl.BlockSpec((tile_n, 1), lambda ci, j: (ci * per_core + j, 0)),
        ],
        out_specs=pl.BlockSpec((1, 3, _SUB, _LANE), lambda ci, j: (ci, 0, 0, 0)),
        compiler_params=pltpu.CompilerParams(
            dimension_semantics=("parallel", "arbitrary"),
            vmem_limit_bytes=_VMEM_LIMIT,
        ),
    )(xp, yp)


# ----------------------------------------------------------------------------
# Public wrapper
# ----------------------------------------------------------------------------
@functools.partial(jax.jit, static_argnames=("smax_weight", "mult"))
def imlm_loss(x, y, *, smax_weight: float = 0.0, mult: float = 1.0):
    """Pallas implementation of ImlmLoss.forward.

    x: (N, C) log class posteriors (C >= 2), any float dtype
    y: (N,)   binary labels (0 or 1); bool / int / float
    Returns a scalar f32.
    """
    n, c = x.shape
    assert c >= 2, "ImlmLoss requires at least 2 class columns"
    y = y.reshape(n)

    if smax_weight > 0:
        parts = _imlm_softmax_partials(x, y, float(smax_weight), float(mult))
    else:
        parts = _imlm_dense_partials(x, y)

    a = jnp.sum(parts[:, 0])                 # sum(x0 * y)
    b = jnp.sum(parts[:, 1])                 # sum(x1 * (1 - y))
    s = jnp.sum(parts[:, 2])                 # sum(y)
    neg = jnp.where(s > 0, a / jnp.where(s > 0, s, jnp.float32(1.0)), jnp.float32(0.0))
    pos = b / jnp.float32(n)
    return (pos + neg).astype(jnp.float32)


def imlm_loss_ref(x, y, *, smax_weight: float = 0.0, mult: float = 1.0):
    # Pure-JAX reference mirroring the PyTorch forward.
    x = jnp.exp(x.astype(jnp.float32))
    if smax_weight > 0:
        x = jax.nn.softmax(smax_weight * mult * x, axis=-1)
    y = y.astype(jnp.float32)
    sum_y = jnp.sum(y)
    neg = jnp.where(sum_y > 0,
                    jnp.dot(x[:, 0], y) / jnp.where(sum_y > 0, sum_y, 1.0),
                    0.0)
    pos = jnp.dot(x[:, 1], 1.0 - y) / y.shape[0]
    return pos + neg


if __name__ == "__main__":
    key = jax.random.PRNGKey(0)
    kx, ky = jax.random.split(key)

    N, C = 128, 4   # N samples, C log-posterior columns (cols 0/1 used when beta == 0)
    x = jax.random.normal(kx, (N, C), dtype=jnp.float32)
    y = (jax.random.uniform(ky, (N,)) > 0.5).astype(jnp.float32)

    mult = 1.0      # matches nn.Parameter(torch.tensor(1.0)), learn_mult=False

    # Default module config (smax_weight = 0): packed lane-dense streaming path.
    out = jax.block_until_ready(imlm_loss(x, y, smax_weight=0.0, mult=mult))
    ref = imlm_loss_ref(x, y, smax_weight=0.0, mult=mult)
    assert jnp.allclose(out, ref, rtol=1e-4, atol=1e-4), (out, ref)

    # bf16 log-posteriors exercise the no-precast (widen-in-kernel) path.
    xb = x.astype(jnp.bfloat16)
    out_b = jax.block_until_ready(imlm_loss(xb, y))
    ref_b = imlm_loss_ref(xb, y)
    assert jnp.allclose(out_b, ref_b, rtol=1e-4, atol=1e-4), (out_b, ref_b)

    # bool labels exercise the narrow-y (int8 stream, widen on VPU) path.
    yb = y.astype(bool)
    out_i = jax.block_until_ready(imlm_loss(x, yb))
    assert jnp.allclose(out_i, ref, rtol=1e-4, atol=1e-4), (out_i, ref)

    # beta > 0 exercises the softmax path (exact division -> tight tolerance).
    out_s = jax.block_until_ready(imlm_loss(x, y, smax_weight=2.0, mult=mult))
    ref_s = imlm_loss_ref(x, y, smax_weight=2.0, mult=mult)
    assert jnp.allclose(out_s, ref_s, rtol=1e-4, atol=1e-4), (out_s, ref_s)

    print("KERNEL_OK")
</pallas_src>

<mosaic_0001>
module attributes {stable_mosaic.version = 11 : i64} {
  func.func @_imlm_dense_kernel(%arg0: i32, %arg1: i32, %arg2: memref<2x32x128xf32, #tpu.memory_space<vmem>>, %arg3: memref<32x128xf32, #tpu.memory_space<vmem>>, %arg4: memref<1x3x8x128xf32, #tpu.memory_space<vmem>>) attributes {dimension_semantics = [#tpu.dimension_semantics<parallel>, #tpu.dimension_semantics<arbitrary>], iteration_bounds = array<i64: 1, 1>, scalar_prefetch = 0 : i64, scratch_operands = 0 : i64, tpu.core_type = #tpu.core_type<tc>, window_params = [{transform_indices = @transform_0, window_bounds = array<i64: 2, 32, 128>}, {transform_indices = @transform_1, window_bounds = array<i64: 32, 128>}, {transform_indices = @transform_2, window_bounds = array<i64: 1, 3, 8, 128>}]} {
    %c0_i32 = arith.constant 0 : i32
    %0 = arith.cmpi eq, %arg1, %c0_i32 : i32
    %1 = arith.extui %0 : i1 to i32
    %c0_i32_0 = arith.constant 0 : i32
    %2 = arith.cmpi ne, %1, %c0_i32_0 : i32
    scf.if %2 {
      %cst_33 = arith.constant 0.000000e+00 : f32
      %38 = vector.broadcast %cst_33 : f32 to vector<1x3x8x128xf32>
      %c0_34 = arith.constant 0 : index
      %c0_35 = arith.constant 0 : index
      %c0_36 = arith.constant 0 : index
      %c0_37 = arith.constant 0 : index
      %39 = vector.load %arg4[%c0_34, %c0_35, %c0_36, %c0_37] : memref<1x3x8x128xf32, #tpu.memory_space<vmem>>, vector<1x3x8x128xf32>
      tpu.vector_store %arg4[%c0_34, %c0_35, %c0_36, %c0_37], %38 {strides = array<i32>} : memref<1x3x8x128xf32, #tpu.memory_space<vmem>>, vector<1x3x8x128xf32>,
    } else {
    }
    %c0 = arith.constant 0 : index
    %c0_1 = arith.constant 0 : index
    %3 = vector.load %arg3[%c0, %c0_1] : memref<32x128xf32, #tpu.memory_space<vmem>>, vector<32x128xf32>
    %c0_2 = arith.constant 0 : index
    %c0_3 = arith.constant 0 : index
    %c0_4 = arith.constant 0 : index
    %4 = vector.load %arg2[%c0_2, %c0_3, %c0_4] : memref<2x32x128xf32, #tpu.memory_space<vmem>>, vector<1x32x128xf32>
    %5 = vector.shape_cast %4 : vector<1x32x128xf32> to vector<32x128xf32>
    %6 = math.exp %5 : vector<32x128xf32>
    %c1 = arith.constant 1 : index
    %c0_5 = arith.constant 0 : index
    %c0_6 = arith.constant 0 : index
    %7 = vector.load %arg2[%c1, %c0_5, %c0_6] : memref<2x32x128xf32, #tpu.memory_space<vmem>>, vector<1x32x128xf32>
    %8 = vector.shape_cast %7 : vector<1x32x128xf32> to vector<32x128xf32>
    %9 = math.exp %8 : vector<32x128xf32>
    %c0_7 = arith.constant 0 : index
    %c0_8 = arith.constant 0 : index
    %c0_9 = arith.constant 0 : index
    %c0_10 = arith.constant 0 : index
    %10 = vector.load %arg4[%c0_7, %c0_8, %c0_9, %c0_10] : memref<1x3x8x128xf32, #tpu.memory_space<vmem>>, vector<1x1x8x128xf32>
    %11 = vector.shape_cast %10 : vector<1x1x8x128xf32> to vector<8x128xf32>
    %12 = arith.mulf %6, %3 : vector<32x128xf32>
    %13 = vector.shape_cast %12 : vector<32x128xf32> to vector<4x8x128xf32>
    %cst = arith.constant dense<0.000000e+00> : vector<8x128xf32>
    %14 = vector.multi_reduction <add>, %13, %cst [0] : vector<4x8x128xf32> to vector<8x128xf32>
    %15 = arith.addf %11, %14 : vector<8x128xf32>
    %c0_11 = arith.constant 0 : index
    %c0_12 = arith.constant 0 : index
    %c0_13 = arith.constant 0 : index
    %c0_14 = arith.constant 0 : index
    %16 = vector.load %arg4[%c0_11, %c0_12, %c0_13, %c0_14] : memref<1x3x8x128xf32, #tpu.memory_space<vmem>>, vector<1x1x8x128xf32>
    %17 = vector.shape_cast %16 : vector<1x1x8x128xf32> to vector<8x128xf32>
    %18 = vector.shape_cast %15 : vector<8x128xf32> to vector<1x1x8x128xf32>
    tpu.vector_store %arg4[%c0_11, %c0_12, %c0_13, %c0_14], %18 {strides = array<i32>} : memref<1x3x8x128xf32, #tpu.memory_space<vmem>>, vector<1x1x8x128xf32>,
    %c0_15 = arith.constant 0 : index
    %c1_16 = arith.constant 1 : index
    %c0_17 = arith.constant 0 : index
    %c0_18 = arith.constant 0 : index
    %19 = vector.load %arg4[%c0_15, %c1_16, %c0_17, %c0_18] : memref<1x3x8x128xf32, #tpu.memory_space<vmem>>, vector<1x1x8x128xf32>
    %20 = vector.shape_cast %19 : vector<1x1x8x128xf32> to vector<8x128xf32>
    %cst_19 = arith.constant 1.000000e+00 : f32
    %21 = vector.broadcast %cst_19 : f32 to vector<32x128xf32>
    %22 = arith.subf %21, %3 : vector<32x128xf32>
    %23 = arith.mulf %9, %22 : vector<32x128xf32>
    %24 = vector.shape_cast %23 : vector<32x128xf32> to vector<4x8x128xf32>
    %cst_20 = arith.constant dense<0.000000e+00> : vector<8x128xf32>
    %25 = vector.multi_reduction <add>, %24, %cst_20 [0] : vector<4x8x128xf32> to vector<8x128xf32>
    %26 = arith.addf %20, %25 : vector<8x128xf32>
    %c0_21 = arith.constant 0 : index
    %c1_22 = arith.constant 1 : index
    %c0_23 = arith.constant 0 : index
    %c0_24 = arith.constant 0 : index
    %27 = vector.load %arg4[%c0_21, %c1_22, %c0_23, %c0_24] : memref<1x3x8x128xf32, #tpu.memory_space<vmem>>, vector<1x1x8x128xf32>
    %28 = vector.shape_cast %27 : vector<1x1x8x128xf32> to vector<8x128xf32>
    %29 = vector.shape_cast %26 : vector<8x128xf32> to vector<1x1x8x128xf32>
    tpu.vector_store %arg4[%c0_21, %c1_22, %c0_23, %c0_24], %29 {strides = array<i32>} : memref<1x3x8x128xf32, #tpu.memory_space<vmem>>, vector<1x1x8x128xf32>,
    %c0_25 = arith.constant 0 : index
    %c2 = arith.constant 2 : index
    %c0_26 = arith.constant 0 : index
    %c0_27 = arith.constant 0 : index
    %30 = vector.load %arg4[%c0_25, %c2, %c0_26, %c0_27] : memref<1x3x8x128xf32, #tpu.memory_space<vmem>>, vector<1x1x8x128xf32>
    %31 = vector.shape_cast %30 : vector<1x1x8x128xf32> to vector<8x128xf32>
    %32 = vector.shape_cast %3 : vector<32x128xf32> to vector<4x8x128xf32>
    %cst_28 = arith.constant dense<0.000000e+00> : vector<8x128xf32>
    %33 = vector.multi_reduction <add>, %32, %cst_28 [0] : vector<4x8x128xf32> to vector<8x128xf32>
    %34 = arith.addf %31, %33 : vector<8x128xf32>
    %c0_29 = arith.constant 0 : index
    %c2_30 = arith.constant 2 : index
    %c0_31 = arith.constant 0 : index
    %c0_32 = arith.constant 0 : index
    %35 = vector.load %arg4[%c0_29, %c2_30, %c0_31, %c0_32] : memref<1x3x8x128xf32, #tpu.memory_space<vmem>>, vector<1x1x8x128xf32>
    %36 = vector.shape_cast %35 : vector<1x1x8x128xf32> to vector<8x128xf32>
    %37 = vector.shape_cast %34 : vector<8x128xf32> to vector<1x1x8x128xf32>
    tpu.vector_store %arg4[%c0_29, %c2_30, %c0_31, %c0_32], %37 {strides = array<i32>} : memref<1x3x8x128xf32, #tpu.memory_space<vmem>>, vector<1x1x8x128xf32>,
    return
  }
  func.func @transform_0(%arg0: i32, %arg1: i32) -> (i32, i32, i32) {
    %c1_i32 = arith.constant 1 : i32
    %0 = arith.muli %arg0, %c1_i32 : i32
    %1 = arith.addi %0, %arg1 : i32
    %c0_i32 = arith.constant 0 : i32
    %c0_i32_0 = arith.constant 0 : i32
    %c0_i32_1 = arith.constant 0 : i32
    return %c0_i32, %1, %c0_i32_0 : i32, i32, i32
  }
  func.func @transform_1(%arg0: i32, %arg1: i32) -> (i32, i32) {
    %c1_i32 = arith.constant 1 : i32
    %0 = arith.muli %arg0, %c1_i32 : i32
    %1 = arith.addi %0, %arg1 : i32
    %c0_i32 = arith.constant 0 : i32
    %c0_i32_0 = arith.constant 0 : i32
    return %1, %c0_i32 : i32, i32
  }
  func.func @transform_2(%arg0: i32, %arg1: i32) -> (i32, i32, i32, i32) {
    %c0_i32 = arith.constant 0 : i32
    %c0_i32_0 = arith.constant 0 : i32
    %c0_i32_1 = arith.constant 0 : i32
    %c0_i32_2 = arith.constant 0 : i32
    return %arg0, %c0_i32, %c0_i32_0, %c0_i32_1 : i32, i32, i32, i32
  }
}

</mosaic_0001>

<llo_original>
// kernel: imlm_loss.1
$region0: #{imlm_loss.1}
  #allocation0 [shape = 'u32[]', space=smem, size = 0x4, offset = 0x4, fixed_abs, tag = 'smem constant byte address 0x4 - core index']
  #allocation1 [shape = 'u32[144,128]{1,0:T(1,128)}', space=vmem, size = 0x12000, scoped, tag = 'internal scratch']
  %s0 = inlined_call_operand.vmem [shape: f32[2,32,128], index: 0, kind: input, shape index: {}]
  %s1 = inlined_call_operand.vmem [shape: f32[32,128], index: 1, kind: input, shape index: {}]
  %s2 = inlined_call_operand.vmem [shape: f32[1,3,8,128], index: 2, kind: output, shape index: {}]
  %s3 = sld [smem:[#allocation0]]
  $region22: #{imlm_loss.1} parent=0
    _
  %s5 = ssub.s32 1, %s3
  %s6 = scalar_select 0, %s5, %s3
  // Predicated region
  $region2: #{imlm_loss.1} parent=0 // pred_check
    _
  $region3: #{imlm_loss.1} parent=0 // pred_check_branch
    %8 = sbr.rel (0) target = $region5
  $region4: #{imlm_loss.1} parent=0 // pred_region
    %s9 = sadd.s32 0, 0
    %s10 = smul.u32 4, %s9
    %p11 = scmp.lt.s32.totalorder %s10, 3
    %s12 = scalar_select %p11, %s10, 3
    %s13 = smul.addr %s12, 8
    %s14 = scalar_lea.vmem %s0, %s13
    %s15 = sadd.s32 0, 0
    %s16 = smul.u32 4, %s15
  $region5: #{imlm_loss.1} parent=0 // pred_fallthru
    _
  // Predicated region
  $region6: #{imlm_loss.1} parent=0 // pred_check
    _
  $region7: #{imlm_loss.1} parent=0 // pred_check_branch
    %18 = sbr.rel (0) target = $region9
  $region8: #{imlm_loss.1} parent=0 // pred_region
    %s19 = sadd.s32 0, 0
    %s20 = smul.u32 4, %s19
    %p21 = scmp.lt.s32.totalorder %s20, 3
    %s22 = scalar_select %p21, %s20, 3
    %s23 = smul.addr %s22, 8
    %s24 = scalar_lea.vmem %s1, %s23
    %s25 = sadd.s32 0, 0
    %s26 = smul.u32 4, %s25
  $region9: #{imlm_loss.1} parent=0 // pred_fallthru
    _
  %s27 = sadd.s32 0, 0
  %s28 = smul.u32 4, %s27
  %p29 = scmp.lt.s32.totalorder %s28, 3
  %s30 = scalar_select %p29, %s28, 3
  %s31 = smul.addr %s30, 8
  %s32 = scalar_lea.vmem %s0, %s31
  %s33 = sadd.s32 0, 0
  %s34 = smul.u32 4, %s33
  %p35 = scmp.lt.s32.totalorder %s34, 3
  %s36 = scalar_select %p35, %s34, 3
  %s37 = smul.addr %s36, 8
  %s38 = scalar_lea.vmem %s1, %s37
  %s39 = sadd.s32 0, 0
  %s40 = smul.u32 4, %s39
  %p41 = scmp.lt.s32.totalorder %s40, 3
  %s42 = scalar_select %p41, %s40, 3
  %s43 = smul.addr %s42, 8
  %s44 = scalar_lea.vmem %s0, %s43
  %s45 = sadd.s32 0, 0
  %s46 = smul.u32 4, %s45
  %s47 = sadd.s32 0, 0
  %s48 = smul.u32 4, %s47
  %p49 = scmp.lt.s32.totalorder %s48, 3
  %s50 = scalar_select %p49, %s48, 3
  %s51 = smul.addr %s50, 8
  %s52 = scalar_lea.vmem %s1, %s51
  %s53 = sadd.s32 0, 0
  %s54 = smul.u32 4, %s53
  %p55 = scmp.eq.s32.totalorder 0, 0
  // Predicated region
  $region10: #{imlm_loss.1} parent=0 // pred_check
    %p56 = pneg %p55
  $region11: #{imlm_loss.1} parent=0 // pred_check_branch
    %58 = sbr.rel (%p56) target = $region13
  $region12: #{imlm_loss.1} parent=0 // pred_region
    %59 = vst [vmem:[%s2] sm:$0xff] 0.0
    %60 = vst [vmem:[%s2 + $0x8] sm:$0xff] 0.0
    %61 = vst [vmem:[%s2 + $0x10] sm:$0xff] 0.0
  $region13: #{imlm_loss.1} parent=0 // pred_fallthru
    _
  %v62 = vld [vmem:[%s52] sm:$0xff]
  %v63 = vld [vmem:[%s52 + $0x8] sm:$0xff]
  %v64 = vld [vmem:[%s52 + $0x10] sm:$0xff]
  %v65 = vld [vmem:[%s52 + $0x18] sm:$0xff]
  %v66 = vld [vmem:[%s44] sm:$0xff]
  %v67 = vld [vmem:[%s44 + $0x8] sm:$0xff]
  %v68 = vld [vmem:[%s44 + $0x10] sm:$0xff]
  %v69 = vld [vmem:[%s44 + $0x18] sm:$0xff]
  %v70 = vmul.f32 %v66, 1.442695
  %v71 = vpow.pop %v70
  %v72 = vmul.f32 %v67, 1.442695
  %v73 = vpow.pop %v72
  %v74 = vmul.f32 %v68, 1.442695
  %v75 = vpow.pop %v74
  %v76 = vmul.f32 %v69, 1.442695
  %v77 = vpow.pop %v76
  %s78 = scalar_lea.vmem %s44, 32
  %v79 = vld [vmem:[%s78] sm:$0xff]
  %v80 = vld [vmem:[%s78 + $0x8] sm:$0xff]
  %v81 = vld [vmem:[%s78 + $0x10] sm:$0xff]
  %v82 = vld [vmem:[%s78 + $0x18] sm:$0xff]
  %v83 = vmul.f32 %v79, 1.442695
  %v84 = vpow.pop %v83
  %v85 = vmul.f32 %v80, 1.442695
  %v86 = vpow.pop %v85
  %v87 = vmul.f32 %v81, 1.442695
  %v88 = vpow.pop %v87
  %v89 = vmul.f32 %v82, 1.442695
  %v90 = vpow.pop %v89
  %v91 = vld [vmem:[%s2] sm:$0xff]
  %v92 = vmul.f32 %v71, %v62
  %v93 = vmul.f32 %v73, %v63
  %v94 = vmul.f32 %v75, %v64
  %v95 = vmul.f32 %v77, %v65
  %v96 = vadd.f32 %v92, %v93
  %v97 = vadd.f32 %v96, %v94
  %v98 = vadd.f32 %v97, %v95
  %v99 = vadd.f32 %v91, %v98
  %100 = vst [vmem:[%s2] sm:$0xff] %v99
  %s101 = scalar_lea.vmem %s2, 8
  %v102 = vld [vmem:[%s101] sm:$0xff]
  %v103 = vsub.f32 1.0, %v62
  %v104 = vsub.f32 1.0, %v63
  %v105 = vsub.f32 1.0, %v64
  %v106 = vsub.f32 1.0, %v65
  %v107 = vmul.f32 %v84, %v103
  %v108 = vmul.f32 %v86, %v104
  %v109 = vmul.f32 %v88, %v105
  %v110 = vmul.f32 %v90, %v106
  %v111 = vadd.f32 %v107, %v108
  %v112 = vadd.f32 %v111, %v109
  %v113 = vadd.f32 %v112, %v110
  %v114 = vadd.f32 %v102, %v113
  %115 = vst [vmem:[%s101] sm:$0xff] %v114
  %s116 = scalar_lea.vmem %s2, 16
  %v117 = vld [vmem:[%s116] sm:$0xff]
  %v118 = vadd.f32 %v62, %v63
  %v119 = vadd.f32 %v118, %v64
  %v120 = vadd.f32 %v119, %v65
  %v121 = vadd.f32 %v117, %v120
  %122 = vst [vmem:[%s116] sm:$0xff] %v121
  // Predicated region
  $region14: #{imlm_loss.1} parent=0 // pred_check
    _
  $region15: #{imlm_loss.1} parent=0 // pred_check_branch
    %124 = sbr.rel (0) target = $region17
  $region16: #{imlm_loss.1} parent=0 // pred_region
    _
  $region17: #{imlm_loss.1} parent=0 // pred_fallthru
    _
  // Predicated region
  $region18: #{imlm_loss.1} parent=0 // pred_check
    _
  $region19: #{imlm_loss.1} parent=0 // pred_check_branch
    %126 = sbr.rel (0) target = $region21
  $region20: #{imlm_loss.1} parent=0 // pred_region
    _
  $region21: #{imlm_loss.1} parent=0 // pred_fallthru
    _

</llo_original>
